<compile_context>
chip_gen: v7x
topology: tpu7x:2x2x1
jax: 0.10.0
libtpu: 0.0.40
codegen_flags: <defaults>
</compile_context>

<pallas_src>
import functools

import jax
import jax.numpy as jnp
from jax.experimental import pallas as pl
from jax.experimental.pallas import tpu as pltpu


def _round_up(v, m):
    return ((v + m - 1) // m) * m


def _pad2d(a, rows, cols):
    r, c = a.shape
    return jnp.pad(a, ((0, rows - r), (0, cols - c)))


# ---------------------------------------------------------------------------
# Tile selection (generation-safe: working set capped for v7x's 64 MiB VMEM/TC)
# ---------------------------------------------------------------------------

_VMEM_BUDGET = 24 * 1024 * 1024  # leave headroom under v7x's 32 MiB default scoped VMEM


def _layer_vmem_bytes(tm, tk, c_in_pad, c_out_pad, out_bytes):
    a = 2 * tm * tk * 1                    # int8 adjacency tiles, double-buffered
    xk = 2 * tk * c_in_pad * 2             # bf16 neighbor-feature tiles
    xi = 2 * tm * c_in_pad * 2             # bf16 self-feature tiles
    inv = 2 * tm * 128 * 4                 # (tm, 1) f32, lane-padded to 128
    w = 2 * 2 * c_in_pad * c_out_pad * 2   # [W_l; W_r] bf16
    b = 2 * 8 * c_out_pad * 4              # bias
    out = 2 * tm * c_out_pad * out_bytes   # output tiles
    acc = tm * c_in_pad * 4                # f32 accumulator scratch
    epi = tm * 2 * c_in_pad * 2            # concat temp in epilogue
    return a + xk + xi + inv + w + b + out + acc + epi


def _pick_tiles(n, c_in_pad, c_out_pad, out_bytes):
    """Return (n_pad, tm, tk)."""
    n128 = _round_up(max(n, 8), 128)
    if n128 <= 256:
        return n128, n128, n128
    if n128 <= 1024:
        # Whole K resident; split rows in two so both v7x TensorCores stay busy.
        tm = n128 // 2 if n128 % 256 == 0 else n128
        return n128, tm, n128
    tk = 512
    n_pad = _round_up(n, tk)
    tm = tk
    for cand in (2048, 1024):
        if (n_pad % cand == 0 and n_pad // cand >= 2 and
                _layer_vmem_bytes(cand, tk, c_in_pad, c_out_pad, out_bytes)
                <= _VMEM_BUDGET):
            tm = cand
            break
    return n_pad, tm, tk


# ---------------------------------------------------------------------------
# SAGEConv layer kernel
# ---------------------------------------------------------------------------

def _sage_conv_kernel(a_ref, xk_ref, xi_ref, inv_ref, w_ref, b_ref, o_ref,
                      acc_ref, *, apply_relu):
    k = pl.program_id(1)

    @pl.when(k == 0)
    def _init():
        acc_ref[...] = jnp.zeros_like(acc_ref)

    # int8 edge counts -> bf16 on the VPU (halves HBM A traffic; exact values),
    # then MXU accumulate in f32.
    a_bf16 = a_ref[...].astype(jnp.float32).astype(jnp.bfloat16)
    acc_ref[...] += jnp.dot(a_bf16, xk_ref[...],
                            preferred_element_type=jnp.float32)

    @pl.when(k == pl.num_programs(1) - 1)
    def _finalize():
        # Mean normalization in f32 (exact 1/deg), then fused projection:
        #   [mean_agg | x_self] @ [W_l ; W_r] + b   (one MXU launch, K = 2*c_in_pad)
        agg = acc_ref[...] * inv_ref[...]
        z = jnp.concatenate([agg.astype(jnp.bfloat16), xi_ref[...]], axis=-1)
        out = jnp.dot(z, w_ref[...], preferred_element_type=jnp.float32)
        out = out + b_ref[...]
        if apply_relu:
            out = jnp.maximum(out, 0.0)
        o_ref[...] = out.astype(o_ref.dtype)


def sage_conv(adj_p, inv_deg_p, x_p, w_l, w_r, bias, *, apply_relu, out_dtype,
              tm, tk):
    """One SAGEConv layer on padded inputs. Returns [n_pad, c_out_pad]."""
    n_pad = adj_p.shape[0]
    c_in_pad = x_p.shape[1]
    c_out = w_l.shape[1]
    c_out_pad = _round_up(c_out, 128)

    # Zero-pad weights/bias to lane-dense shapes; concat W_l / W_r along K.
    wl_p = _pad2d(w_l, c_in_pad, c_out_pad)
    wr_p = _pad2d(w_r, c_in_pad, c_out_pad)
    w_cat = jnp.concatenate([wl_p, wr_p], axis=0).astype(jnp.bfloat16)
    b_p = _pad2d(bias, 1, c_out_pad).astype(jnp.float32)

    grid = (n_pad // tm, n_pad // tk)
    kernel = functools.partial(_sage_conv_kernel, apply_relu=apply_relu)

    return pl.pallas_call(
        kernel,
        out_shape=jax.ShapeDtypeStruct((n_pad, c_out_pad), out_dtype),
        grid_spec=pltpu.PrefetchScalarGridSpec(
            num_scalar_prefetch=0,
            grid=grid,
            in_specs=[
                pl.BlockSpec((tm, tk), lambda i, k: (i, k)),            # A (int8)
                pl.BlockSpec((tk, c_in_pad), lambda i, k: (k, 0)),      # X neighbors
                pl.BlockSpec((tm, c_in_pad), lambda i, k: (i, 0)),      # X self rows
                pl.BlockSpec((tm, 1), lambda i, k: (i, 0)),             # 1/deg (f32)
                pl.BlockSpec((2 * c_in_pad, c_out_pad), lambda i, k: (0, 0)),  # [W_l;W_r]
                pl.BlockSpec((1, c_out_pad), lambda i, k: (0, 0)),      # bias
            ],
            out_specs=pl.BlockSpec((tm, c_out_pad), lambda i, k: (i, 0)),
            scratch_shapes=[pltpu.VMEM((tm, c_in_pad), jnp.float32)],
        ),
        compiler_params=pltpu.CompilerParams(
            dimension_semantics=("parallel", "arbitrary"),
            vmem_limit_bytes=32 * 1024 * 1024),
    )(adj_p, x_p, x_p, inv_deg_p, w_cat, b_p)


# ---------------------------------------------------------------------------
# Graph preprocessing (single cheap pass, int8 layout shared by both layers)
# ---------------------------------------------------------------------------

def build_graph_inputs(edge_index, num_nodes, n_pad):
    """Un-normalized int8 edge-count adjacency (dst rows, src cols), scattered
    directly into the padded layout, plus f32 reciprocal in-degree."""
    src = edge_index[0]
    dst = edge_index[1]
    e = src.shape[0]
    adj = jnp.zeros((n_pad, n_pad), jnp.int8).at[dst, src].add(
        jnp.ones((e,), jnp.int8))
    deg = jnp.zeros((num_nodes,), jnp.float32).at[dst].add(1.0)
    inv_deg = 1.0 / jnp.maximum(deg, 1.0)
    inv_deg_p = jnp.zeros((n_pad, 1), jnp.float32).at[:num_nodes, 0].set(inv_deg)
    return adj, inv_deg_p


def init_params(key, in_channels, hidden_channels, out_channels):
    """Deterministic Glorot-style init, shapes mirror PyG SAGEConv (lin_l, lin_r)."""
    ks = jax.random.split(key, 4)

    def glorot(k, fan_in, fan_out):
        limit = jnp.sqrt(6.0 / (fan_in + fan_out))
        return jax.random.uniform(k, (fan_in, fan_out), jnp.float32, -limit, limit)

    return {
        "conv1": {
            "w_l": glorot(ks[0], in_channels, hidden_channels),
            "w_r": glorot(ks[1], in_channels, hidden_channels),
            "b": jnp.zeros((1, hidden_channels), jnp.float32),
        },
        "conv2": {
            "w_l": glorot(ks[2], hidden_channels, out_channels),
            "w_r": glorot(ks[3], hidden_channels, out_channels),
            "b": jnp.zeros((1, out_channels), jnp.float32),
        },
    }


def graphsage_forward(params, x, edge_index):
    n, c_in = x.shape
    hidden_channels = params["conv1"]["w_l"].shape[1]
    out_channels = params["conv2"]["w_l"].shape[1]

    c_in_pad = _round_up(c_in, 128)
    c_hid_pad = _round_up(hidden_channels, 128)
    c_out_pad = _round_up(out_channels, 128)
    c_max = max(c_in_pad, c_hid_pad, c_out_pad)

    n_pad, tm, tk = _pick_tiles(n, c_max, c_max, out_bytes=4)

    adj_p, inv_deg_p = build_graph_inputs(edge_index, n, n_pad)
    x_p = _pad2d(x, n_pad, c_in_pad).astype(jnp.bfloat16)

    h = sage_conv(adj_p, inv_deg_p, x_p,
                  params["conv1"]["w_l"], params["conv1"]["w_r"],
                  params["conv1"]["b"], apply_relu=True,
                  out_dtype=jnp.bfloat16, tm=tm, tk=tk)
    # dropout(0.5) in eval mode -> identity
    out_p = sage_conv(adj_p, inv_deg_p, h,
                      params["conv2"]["w_l"], params["conv2"]["w_r"],
                      params["conv2"]["b"], apply_relu=False,
                      out_dtype=jnp.float32, tm=tm, tk=tk)
    return out_p[:n, :out_channels]


def _reference_forward(params, x, edge_index):
    """Pure-JAX f32 reference for sanity checking."""
    n = x.shape[0]
    src, dst = edge_index[0], edge_index[1]
    adj = jnp.zeros((n, n), jnp.float32).at[dst, src].add(1.0)
    adj = adj / jnp.maximum(jnp.sum(adj, axis=1, keepdims=True), 1.0)
    p1, p2 = params["conv1"], params["conv2"]
    h = jnp.maximum(adj @ x @ p1["w_l"] + x @ p1["w_r"] + p1["b"], 0.0)
    return adj @ h @ p2["w_l"] + h @ p2["w_r"] + p2["b"]


if __name__ == "__main__":
    key = jax.random.PRNGKey(0)
    k_feat, k_edge, k_param = jax.random.split(key, 3)

    num_nodes = 64
    in_channels, hidden_channels, out_channels = 16, 32, 8
    num_edges = 256

    x = jax.random.normal(k_feat, (num_nodes, in_channels), jnp.float32)
    edge_index = jax.random.randint(k_edge, (2, num_edges), 0, num_nodes,
                                    dtype=jnp.int32)

    params = init_params(k_param, in_channels, hidden_channels, out_channels)

    out = graphsage_forward(params, x, edge_index)
    jax.block_until_ready(out)
    assert out.shape == (num_nodes, out_channels)

    ref = _reference_forward(params, x, edge_index)
    assert jnp.allclose(out, ref, rtol=0.1, atol=0.1), "mismatch vs f32 reference"

    print("KERNEL_OK")
</pallas_src>

<mosaic_0001>
module attributes {stable_mosaic.version = 11 : i64} {
  func.func @_sage_conv_kernel(%arg0: i32, %arg1: i32, %arg2: memref<128x128xi8, #tpu.memory_space<vmem>>, %arg3: memref<128x128xbf16, #tpu.memory_space<vmem>>, %arg4: memref<128x128xbf16, #tpu.memory_space<vmem>>, %arg5: memref<128x1xf32, #tpu.memory_space<vmem>>, %arg6: memref<256x128xbf16, #tpu.memory_space<vmem>>, %arg7: memref<1x128xf32, #tpu.memory_space<vmem>>, %arg8: memref<128x128xbf16, #tpu.memory_space<vmem>>, %arg9: memref<128x128xf32, #tpu.memory_space<vmem>>) attributes {dimension_semantics = [#tpu.dimension_semantics<parallel>, #tpu.dimension_semantics<arbitrary>], iteration_bounds = array<i64: 1, 1>, scalar_prefetch = 0 : i64, scratch_operands = 1 : i64, tpu.core_type = #tpu.core_type<tc>, window_params = [{transform_indices = @transform_0, window_bounds = array<i64: 128, 128>}, {transform_indices = @transform_1, window_bounds = array<i64: 128, 128>}, {transform_indices = @transform_2, window_bounds = array<i64: 128, 128>}, {transform_indices = @transform_3, window_bounds = array<i64: 128, 1>}, {pipeline_mode = #tpu.pipeline_mode<synchronous>, transform_indices = @transform_4, window_bounds = array<i64: 256, 128>}, {pipeline_mode = #tpu.pipeline_mode<synchronous>, transform_indices = @transform_5, window_bounds = array<i64: 1, 128>}, {transform_indices = @transform_6, window_bounds = array<i64: 128, 128>}]} {
    %c0_i32 = arith.constant 0 : i32
    %0 = arith.cmpi eq, %arg1, %c0_i32 : i32
    %1 = arith.extui %0 : i1 to i32
    %c0_i32_0 = arith.constant 0 : i32
    %2 = arith.cmpi ne, %1, %c0_i32_0 : i32
    scf.if %2 {
      %cst_10 = arith.constant 0.000000e+00 : f32
      %14 = vector.broadcast %cst_10 : f32 to vector<128x128xf32>
      %c0_11 = arith.constant 0 : index
      %c0_12 = arith.constant 0 : index
      %15 = vector.load %arg9[%c0_11, %c0_12] : memref<128x128xf32, #tpu.memory_space<vmem>>, vector<128x128xf32>
      tpu.vector_store %arg9[%c0_11, %c0_12], %14 {strides = array<i32>} : memref<128x128xf32, #tpu.memory_space<vmem>>, vector<128x128xf32>,
    } else {
    }
    %c0 = arith.constant 0 : index
    %c0_1 = arith.constant 0 : index
    %3 = vector.load %arg2[%c0, %c0_1] : memref<128x128xi8, #tpu.memory_space<vmem>>, vector<128x128xi8>
    %4 = arith.sitofp %3 : vector<128x128xi8> to vector<128x128xf32>
    %5 = arith.truncf %4 : vector<128x128xf32> to vector<128x128xbf16>
    %c0_2 = arith.constant 0 : index
    %c0_3 = arith.constant 0 : index
    %6 = vector.load %arg9[%c0_2, %c0_3] : memref<128x128xf32, #tpu.memory_space<vmem>>, vector<128x128xf32>
    %c0_4 = arith.constant 0 : index
    %c0_5 = arith.constant 0 : index
    %7 = vector.load %arg3[%c0_4, %c0_5] : memref<128x128xbf16, #tpu.memory_space<vmem>>, vector<128x128xbf16>
    %cst = arith.constant dense<0.000000e+00> : vector<128x128xf32>
    %8 = tpu.matmul %5, %7, %cst {dimension_numbers = #tpu.dot_dimension_numbers<[1], [0], [0], [1], [0, 0, 1, 1], [], []>} : vector<128x128xbf16>, vector<128x128xbf16>, vector<128x128xf32> -> vector<128x128xf32>
    %9 = arith.addf %6, %8 : vector<128x128xf32>
    %c0_6 = arith.constant 0 : index
    %c0_7 = arith.constant 0 : index
    %10 = vector.load %arg9[%c0_6, %c0_7] : memref<128x128xf32, #tpu.memory_space<vmem>>, vector<128x128xf32>
    tpu.vector_store %arg9[%c0_6, %c0_7], %9 {strides = array<i32>} : memref<128x128xf32, #tpu.memory_space<vmem>>, vector<128x128xf32>,
    %c0_i32_8 = arith.constant 0 : i32
    %11 = arith.cmpi eq, %arg1, %c0_i32_8 : i32
    %12 = arith.extui %11 : i1 to i32
    %c0_i32_9 = arith.constant 0 : i32
    %13 = arith.cmpi ne, %12, %c0_i32_9 : i32
    scf.if %13 {
      %c0_10 = arith.constant 0 : index
      %c0_11 = arith.constant 0 : index
      %14 = vector.load %arg9[%c0_10, %c0_11] : memref<128x128xf32, #tpu.memory_space<vmem>>, vector<128x128xf32>
      %c0_12 = arith.constant 0 : index
      %c0_13 = arith.constant 0 : index
      %15 = vector.load %arg5[%c0_12, %c0_13] : memref<128x1xf32, #tpu.memory_space<vmem>>, vector<128x1xf32>
      %16 = vector.broadcast %15 : vector<128x1xf32> to vector<128x128xf32>
      %17 = arith.mulf %14, %16 : vector<128x128xf32>
      %18 = arith.truncf %17 : vector<128x128xf32> to vector<128x128xbf16>
      %c0_14 = arith.constant 0 : index
      %c0_15 = arith.constant 0 : index
      %19 = vector.load %arg4[%c0_14, %c0_15] : memref<128x128xbf16, #tpu.memory_space<vmem>>, vector<128x128xbf16>
      %20 = tpu.concatenate %18, %19 in 1 : vector<128x128xbf16>, vector<128x128xbf16> -> vector<128x256xbf16>
      %c0_16 = arith.constant 0 : index
      %c0_17 = arith.constant 0 : index
      %21 = vector.load %arg6[%c0_16, %c0_17] : memref<256x128xbf16, #tpu.memory_space<vmem>>, vector<256x128xbf16>
      %cst_18 = arith.constant dense<0.000000e+00> : vector<128x128xf32>
      %22 = tpu.matmul %20, %21, %cst_18 {dimension_numbers = #tpu.dot_dimension_numbers<[1], [0], [0], [1], [0, 0, 1, 1], [], []>} : vector<128x256xbf16>, vector<256x128xbf16>, vector<128x128xf32> -> vector<128x128xf32>
      %c0_19 = arith.constant 0 : index
      %c0_20 = arith.constant 0 : index
      %23 = vector.load %arg7[%c0_19, %c0_20] : memref<1x128xf32, #tpu.memory_space<vmem>>, vector<1x128xf32>
      %24 = vector.broadcast %23 : vector<1x128xf32> to vector<128x128xf32>
      %25 = arith.addf %22, %24 : vector<128x128xf32>
      %cst_21 = arith.constant 0.000000e+00 : f32
      %26 = vector.broadcast %cst_21 : f32 to vector<128x128xf32>
      %27 = arith.maximumf %25, %26 : vector<128x128xf32>
      %28 = arith.truncf %27 : vector<128x128xf32> to vector<128x128xbf16>
      %c0_22 = arith.constant 0 : index
      %c0_23 = arith.constant 0 : index
      %29 = vector.load %arg8[%c0_22, %c0_23] : memref<128x128xbf16, #tpu.memory_space<vmem>>, vector<128x128xbf16>
      tpu.vector_store %arg8[%c0_22, %c0_23], %28 {strides = array<i32>} : memref<128x128xbf16, #tpu.memory_space<vmem>>, vector<128x128xbf16>,
    } else {
    }
    return
  }
  func.func @transform_0(%arg0: i32, %arg1: i32) -> (i32, i32) {
    %c0_i32 = arith.constant 0 : i32
    return %arg0, %arg1 : i32, i32
  }
  func.func @transform_1(%arg0: i32, %arg1: i32) -> (i32, i32) {
    %c0_i32 = arith.constant 0 : i32
    %c0_i32_0 = arith.constant 0 : i32
    return %arg1, %c0_i32 : i32, i32
  }
  func.func @transform_2(%arg0: i32, %arg1: i32) -> (i32, i32) {
    %c0_i32 = arith.constant 0 : i32
    %c0_i32_0 = arith.constant 0 : i32
    return %arg0, %c0_i32 : i32, i32
  }
  func.func @transform_3(%arg0: i32, %arg1: i32) -> (i32, i32) {
    %c0_i32 = arith.constant 0 : i32
    %c0_i32_0 = arith.constant 0 : i32
    return %arg0, %c0_i32 : i32, i32
  }
  func.func @transform_4(%arg0: i32, %arg1: i32) -> (i32, i32) {
    %c0_i32 = arith.constant 0 : i32
    %c0_i32_0 = arith.constant 0 : i32
    %c0_i32_1 = arith.constant 0 : i32
    return %c0_i32, %c0_i32_0 : i32, i32
  }
  func.func @transform_5(%arg0: i32, %arg1: i32) -> (i32, i32) {
    %c0_i32 = arith.constant 0 : i32
    %c0_i32_0 = arith.constant 0 : i32
    %c0_i32_1 = arith.constant 0 : i32
    return %c0_i32, %c0_i32_0 : i32, i32
  }
  func.func @transform_6(%arg0: i32, %arg1: i32) -> (i32, i32) {
    %c0_i32 = arith.constant 0 : i32
    %c0_i32_0 = arith.constant 0 : i32
    return %arg0, %c0_i32 : i32, i32
  }
}

</mosaic_0001>

<llo_original>
// kernel: tpu_custom_call.1
$region0: #{tpu_custom_call.1}
  #allocation0 [shape = 'u32[]', space=smem, size = 0x4, offset = 0x4, fixed_abs, tag = 'smem constant byte address 0x4 - core index']
  #allocation1 [shape = 'u32[144,128]{1,0:T(1,128)}', space=vmem, size = 0x12000, scoped, tag = 'internal scratch']
  #allocation2 [shape = 'f32[128,128]{1,0:T(8,128)}', space=vmem, size = 0x10000, scoped, tag = 'scratch operand']
  %s0 = inlined_call_operand.hbm [shape: s8[128,128], index: 0, kind: input, shape index: {}]
  %s1 = inlined_call_operand.hbm [shape: bf16[128,128], index: 1, kind: input, shape index: {}]
  %s2 = inlined_call_operand.hbm [shape: bf16[128,128], index: 2, kind: input, shape index: {}]
  %s3 = inlined_call_operand.vmem [shape: f32[128,1], index: 3, kind: input, shape index: {}]
  %s4 = inlined_call_operand.vmem [shape: bf16[256,128], index: 4, kind: input, shape index: {}]
  %s5 = inlined_call_operand.vmem [shape: f32[1,128], index: 5, kind: input, shape index: {}]
  %s6 = inlined_call_operand.hbm [shape: bf16[128,128], index: 6, kind: output, shape index: {}]
  %s7 = sld [smem:[#allocation0]]
  $region54: #{tpu_custom_call.1} parent=0
    _
  %s9 = ssub.s32 1, %s7
  %s10 = scalar_select 0, %s9, %s7
  $region1: #{tpu_custom_call.1} parent=0
    #allocation3 [shape = 'u8[16384]{0}', space=vmem, size = 0x4000, scoped, tag = 'input window, operand 0, single buffered']
    #allocation4 [shape = 's32[1]{0}', space=sflag, size = 0x4, scoped, tag = 'scoped memory for tpu_custom_call.1']
    #allocation5 [shape = 's32[1]{0}', space=sflag, size = 0x4, scoped, tag = 'scoped memory for tpu_custom_call.1']
    #allocation6 [shape = 'u8[32768]{0}', space=vmem, size = 0x8000, scoped, tag = 'input window, operand 1, single buffered']
    #allocation7 [shape = 's32[1]{0}', space=sflag, size = 0x4, scoped, tag = 'scoped memory for tpu_custom_call.1']
    #allocation8 [shape = 'u8[32768]{0}', space=vmem, size = 0x8000, scoped, tag = 'input window, operand 2, single buffered']
    #allocation9 [shape = 'u8[32768]{0}', space=vmem, size = 0x8000, scoped, tag = 'output window, operand 0, single buffered']
    %11 = vsyncpa [#allocation4], 0
    %12 = vsyncpa [#allocation7], 0
    %13 = vsyncpa [#allocation5], 0
    // Predicated region
    $region2: #{tpu_custom_call.1} parent=1 // pred_check
      _
    $region3: #{tpu_custom_call.1} parent=1 // pred_check_branch
      %15 = sbr.rel (0) target = $region5
    $region4: #{tpu_custom_call.1} parent=1 // pred_region
      %s17 = ssub.s32 512, 512
      %18 = vsyncadd [#allocation4], %s17
      %s19 = sshll.u32 [#allocation3], 4
      %s20 = int_to_ptr.vmem [resolvable:$true] %s19
      %25 = dma.hbm_to_vmem [thread:$0]  %s0, 512, %s20, [#allocation4], 128, 128, 8
    $region5: #{tpu_custom_call.1} parent=1 // pred_fallthru
      _
    // Predicated region
    $region6: #{tpu_custom_call.1} parent=1 // pred_check
      _
    $region7: #{tpu_custom_call.1} parent=1 // pred_check_branch
      %27 = sbr.rel (0) target = $region9
    $region8: #{tpu_custom_call.1} parent=1 // pred_region
      %s29 = ssub.s32 1024, 1024
      %30 = vsyncadd [#allocation7], %s29
      %s31 = sshll.u32 [#allocation6], 4
      %s32 = int_to_ptr.vmem [resolvable:$true] %s31
      %37 = dma.hbm_to_vmem [thread:$0]  %s1, 1024, %s32, [#allocation7], 64, 64, 4
    $region9: #{tpu_custom_call.1} parent=1 // pred_fallthru
      _
    // Predicated region
    $region10: #{tpu_custom_call.1} parent=1 // pred_check
      _
    $region11: #{tpu_custom_call.1} parent=1 // pred_check_branch
      %39 = sbr.rel (0) target = $region13
    $region12: #{tpu_custom_call.1} parent=1 // pred_region
      %s41 = ssub.s32 1024, 1024
      %42 = vsyncadd [#allocation7], %s41
      %s43 = sshll.u32 [#allocation8], 4
      %s44 = int_to_ptr.vmem [resolvable:$true] %s43
      %49 = dma.hbm_to_vmem [thread:$0]  %s2, 1024, %s44, [#allocation7], 64, 64, 4
    $region13: #{tpu_custom_call.1} parent=1 // pred_fallthru
      _
    // Predicated region
    $region14: #{tpu_custom_call.1} parent=1 // pred_check
      _
    $region15: #{tpu_custom_call.1} parent=1 // pred_check_branch
      %51 = sbr.rel (0) target = $region17
    $region16: #{tpu_custom_call.1} parent=1 // pred_region
      _
    $region17: #{tpu_custom_call.1} parent=1 // pred_fallthru
      _
    // Predicated region
    $region18: #{tpu_custom_call.1} parent=1 // pred_check
      _
    $region19: #{tpu_custom_call.1} parent=1 // pred_check_branch
      %53 = sbr.rel (0) target = $region21
    $region20: #{tpu_custom_call.1} parent=1 // pred_region
      _
    $region21: #{tpu_custom_call.1} parent=1 // pred_fallthru
      _
    // Predicated region
    $region22: #{tpu_custom_call.1} parent=1 // pred_check
      _
    $region23: #{tpu_custom_call.1} parent=1 // pred_check_branch
      %55 = sbr.rel (0) target = $region25
    $region24: #{tpu_custom_call.1} parent=1 // pred_region
      _
    $region25: #{tpu_custom_call.1} parent=1 // pred_fallthru
      _
    // Predicated region
    $region26: #{tpu_custom_call.1} parent=1 // pred_check
      _
    $region27: #{tpu_custom_call.1} parent=1 // pred_check_branch
      %57 = sbr.rel (0) target = $region29
    $region28: #{tpu_custom_call.1} parent=1 // pred_region
      %58 = dma.done [#allocation4], 512
    $region29: #{tpu_custom_call.1} parent=1 // pred_fallthru
      _
    // Predicated region
    $region30: #{tpu_custom_call.1} parent=1 // pred_check
      _
    $region31: #{tpu_custom_call.1} parent=1 // pred_check_branch
      %60 = sbr.rel (0) target = $region33
    $region32: #{tpu_custom_call.1} parent=1 // pred_region
      %61 = dma.done [#allocation7], 1024
    $region33: #{tpu_custom_call.1} parent=1 // pred_fallthru
      _
    // Predicated region
    $region34: #{tpu_custom_call.1} parent=1 // pred_check
      _
    $region35: #{tpu_custom_call.1} parent=1 // pred_check_branch
      %63 = sbr.rel (0) target = $region37
    $region36: #{tpu_custom_call.1} parent=1 // pred_region
      %64 = dma.done [#allocation7], 1024
    $region37: #{tpu_custom_call.1} parent=1 // pred_fallthru
      _
    %p66 = scmp.eq.s32.totalorder 0, 0
    // Predicated region
    $region38: #{tpu_custom_call.1} parent=1 // pred_check
      %p67 = pneg %p66
    $region39: #{tpu_custom_call.1} parent=1 // pred_check_branch
      %69 = sbr.rel (%p67) target = $region41
    $region40: #{tpu_custom_call.1} parent=1 // pred_region
      %70 = vst [vmem:[#allocation2] sm:$0xff] 0.0
      %71 = vst [vmem:[#allocation2 + $0x8] sm:$0xff] 0.0
      %72 = vst [vmem:[#allocation2 + $0x10] sm:$0xff] 0.0
      %73 = vst [vmem:[#allocation2 + $0x18] sm:$0xff] 0.0
      %74 = vst [vmem:[#allocation2 + $0x20] sm:$0xff] 0.0
      %75 = vst [vmem:[#allocation2 + $0x28] sm:$0xff] 0.0
      %76 = vst [vmem:[#allocation2 + $0x30] sm:$0xff] 0.0
      %77 = vst [vmem:[#allocation2 + $0x38] sm:$0xff] 0.0
      %78 = vst [vmem:[#allocation2 + $0x40] sm:$0xff] 0.0
      %79 = vst [vmem:[#allocation2 + $0x48] sm:$0xff] 0.0
      %80 = vst [vmem:[#allocation2 + $0x50] sm:$0xff] 0.0
      %81 = vst [vmem:[#allocation2 + $0x58] sm:$0xff] 0.0
      %82 = vst [vmem:[#allocation2 + $0x60] sm:$0xff] 0.0
      %83 = vst [vmem:[#allocation2 + $0x68] sm:$0xff] 0.0
      %84 = vst [vmem:[#allocation2 + $0x70] sm:$0xff] 0.0
      %85 = vst [vmem:[#allocation2 + $0x78] sm:$0xff] 0.0
    $region41: #{tpu_custom_call.1} parent=1 // pred_fallthru
      _
    %v86 = vld [vmem:[#allocation3] sm:$0xff]
    %v87 = vld [vmem:[#allocation3 + $0x8] sm:$0xff]
    %v88 = vld [vmem:[#allocation3 + $0x10] sm:$0xff]
    %v89 = vld [vmem:[#allocation3 + $0x18] sm:$0xff]
    %v90 = vunpack.c.l.s8.bf16 %v86
    %v91 = vunpack.c.h.s8.bf16 %v86
    %v92 = vunpack.c.l.s8.bf16 %v87
    %v93 = vunpack.c.h.s8.bf16 %v87
    %v94 = vunpack.c.l.s8.bf16 %v88
    %v95 = vunpack.c.h.s8.bf16 %v88
    %v96 = vunpack.c.l.s8.bf16 %v89
    %v97 = vunpack.c.h.s8.bf16 %v89
    %v98 = vld [vmem:[#allocation2] sm:$0xff]
    %v99 = vld [vmem:[#allocation2 + $0x8] sm:$0xff]
    %v100 = vld [vmem:[#allocation2 + $0x10] sm:$0xff]
    %v101 = vld [vmem:[#allocation2 + $0x18] sm:$0xff]
    %v102 = vld [vmem:[#allocation2 + $0x20] sm:$0xff]
    %v103 = vld [vmem:[#allocation2 + $0x28] sm:$0xff]
    %v104 = vld [vmem:[#allocation2 + $0x30] sm:$0xff]
    %v105 = vld [vmem:[#allocation2 + $0x38] sm:$0xff]
    %v106 = vld [vmem:[#allocation2 + $0x40] sm:$0xff]
    %v107 = vld [vmem:[#allocation2 + $0x48] sm:$0xff]
    %v108 = vld [vmem:[#allocation2 + $0x50] sm:$0xff]
    %v109 = vld [vmem:[#allocation2 + $0x58] sm:$0xff]
    %v110 = vld [vmem:[#allocation2 + $0x60] sm:$0xff]
    %v111 = vld [vmem:[#allocation2 + $0x68] sm:$0xff]
    %v112 = vld [vmem:[#allocation2 + $0x70] sm:$0xff]
    %v113 = vld [vmem:[#allocation2 + $0x78] sm:$0xff]
    %v114 = vld [vmem:[#allocation6] sm:$0xf]
    %v115 = vld [vmem:[#allocation6 + $0x4] sm:$0xf]
    %v116 = vld [vmem:[#allocation6 + $0x8] sm:$0xf]
    %v117 = vld [vmem:[#allocation6 + $0xc] sm:$0xf]
    %v118 = vld [vmem:[#allocation6 + $0x10] sm:$0xf]
    %v119 = vld [vmem:[#allocation6 + $0x14] sm:$0xf]
    %v120 = vld [vmem:[#allocation6 + $0x18] sm:$0xf]
    %v121 = vld [vmem:[#allocation6 + $0x1c] sm:$0xf]
    %v122 = vld [vmem:[#allocation6 + $0x20] sm:$0xf]
    %v123 = vld [vmem:[#allocation6 + $0x24] sm:$0xf]
    %v124 = vld [vmem:[#allocation6 + $0x28] sm:$0xf]
    %v125 = vld [vmem:[#allocation6 + $0x2c] sm:$0xf]
    %v126 = vld [vmem:[#allocation6 + $0x30] sm:$0xf]
    %v127 = vld [vmem:[#allocation6 + $0x34] sm:$0xf]
    %v128 = vld [vmem:[#allocation6 + $0x38] sm:$0xf]
    %v129 = vld [vmem:[#allocation6 + $0x3c] sm:$0xf]
    %v146 = vunpack.c.l.b16 %v114
    %v147 = vunpack.c.l.b16 %v115
    %v148 = vunpack.c.l.b16 %v116
    %v149 = vunpack.c.l.b16 %v117
    %v150 = vunpack.c.l.b16 %v118
    %v151 = vunpack.c.l.b16 %v119
    %v152 = vunpack.c.l.b16 %v120
    %v153 = vunpack.c.l.b16 %v121
    %v154 = vunpack.c.l.b16 %v122
    %v155 = vunpack.c.l.b16 %v123
    %v156 = vunpack.c.l.b16 %v124
    %v157 = vunpack.c.l.b16 %v125
    %v158 = vunpack.c.l.b16 %v126
    %v159 = vunpack.c.l.b16 %v127
    %v160 = vunpack.c.l.b16 %v128
    %v161 = vunpack.c.l.b16 %v129
    %v162 = vpack.c.b16 %v147, %v146
    %v163 = vpack.c.b16 %v149, %v148
    %v164 = vpack.c.b16 %v151, %v150
    %v165 = vpack.c.b16 %v153, %v152
    %v166 = vpack.c.b16 %v155, %v154
    %v167 = vpack.c.b16 %v157, %v156
    %v168 = vpack.c.b16 %v159, %v158
    %v169 = vpack.c.b16 %v161, %v160
    %178 = vmatprep.subr.bf16.mxu0 0
    %179 = vmatpush1.bf16.msra.mxu0 %v162
    %180 = vmatprep.subr.bf16.mxu0 0
    %181 = vmatpush1.bf16.msra.mxu0 %v163
    %182 = vmatprep.subr.bf16.mxu0 0
    %183 = vmatpush1.bf16.msra.mxu0 %v164
    %184 = vmatprep.subr.bf16.mxu0 0
    %185 = vmatpush1.bf16.msra.mxu0 %v165
    %186 = vmatprep.subr.bf16.mxu0 0
    %187 = vmatpush1.bf16.msra.mxu0 %v166
    %188 = vmatprep.subr.bf16.mxu0 0
    %189 = vmatpush1.bf16.msra.mxu0 %v167
    %190 = vmatprep.subr.bf16.mxu0 0
    %191 = vmatpush1.bf16.msra.mxu0 %v168
    %192 = vmatprep.subr.bf16.mxu0 0
    %193 = vmatpush1.bf16.msra.mxu0 %v169
    %194 = vmatprep.subr.bf16.mxu0 0
    %195 = vmatpush1.bf16.msra.mxu0 0
    %196 = vmatprep.subr.bf16.mxu0 0
    %197 = vmatpush1.bf16.msra.mxu0 0
    %198 = vmatprep.subr.bf16.mxu0 0
    %199 = vmatpush1.bf16.msra.mxu0 0
    %200 = vmatprep.subr.bf16.mxu0 0
    %201 = vmatpush1.bf16.msra.mxu0 0
    %202 = vmatprep.subr.bf16.mxu0 0
    %203 = vmatpush1.bf16.msra.mxu0 0
    %204 = vmatprep.subr.bf16.mxu0 0
    %205 = vmatpush1.bf16.msra.mxu0 0
    %206 = vmatprep.subr.bf16.mxu0 0
    %207 = vmatpush1.bf16.msra.mxu0 0
    %208 = vmatprep.subr.bf16.mxu0 0
    %209 = vmatpush1.bf16.msra.mxu0 0
    %210 = vmatprep.mubr.bf16.mxu0 0
    %211 = vmatmul.mubr.bf16.gmra.mrb[0].mxu0 %v90
    %v212 = vpop.f32.mrb[0].mxu0
    %v213 = vadd.f32 0.0, %v212
    %v214 = vpop.f32.mrb[0].mxu0
    %v215 = vpop.f32.mrb[0].mxu0
    %v216 = vadd.f32 0.0, %v215
    %v217 = vpop.f32.mrb[0].mxu0
    %218 = vmatprep.mubr.bf16.mxu0 0
    %219 = vmatmul.mubr.bf16.gmra.mrb[0].mxu0 %v91
    %v220 = vpop.f32.mrb[0].mxu0
    %v221 = vadd.f32 0.0, %v220
    %v222 = vpop.f32.mrb[0].mxu0
    %v223 = vpop.f32.mrb[0].mxu0
    %v224 = vadd.f32 0.0, %v223
    %v225 = vpop.f32.mrb[0].mxu0
    %226 = vmatprep.mubr.bf16.mxu0 0
    %227 = vmatmul.mubr.bf16.gmra.mrb[0].mxu0 %v92
    %v228 = vpop.f32.mrb[0].mxu0
    %v229 = vadd.f32 0.0, %v228
    %v230 = vpop.f32.mrb[0].mxu0
    %v231 = vpop.f32.mrb[0].mxu0
    %v232 = vadd.f32 0.0, %v231
    %v233 = vpop.f32.mrb[0].mxu0
    %234 = vmatprep.mubr.bf16.mxu0 0
    %235 = vmatmul.mubr.bf16.gmra.mrb[0].mxu0 %v93
    %v236 = vpop.f32.mrb[0].mxu0
    %v237 = vadd.f32 0.0, %v236
    %v238 = vpop.f32.mrb[0].mxu0
    %v239 = vpop.f32.mrb[0].mxu0
    %v240 = vadd.f32 0.0, %v239
    %v241 = vpop.f32.mrb[0].mxu0
    %242 = vmatprep.mubr.bf16.mxu0 0
    %243 = vmatmul.mubr.bf16.gmra.mrb[0].mxu0 %v94
    %v244 = vpop.f32.mrb[0].mxu0
    %v245 = vadd.f32 0.0, %v244
    %v246 = vpop.f32.mrb[0].mxu0
    %v247 = vpop.f32.mrb[0].mxu0
    %v248 = vadd.f32 0.0, %v247
    %v249 = vpop.f32.mrb[0].mxu0
    %250 = vmatprep.mubr.bf16.mxu0 0
    %251 = vmatmul.mubr.bf16.gmra.mrb[0].mxu0 %v95
    %v252 = vpop.f32.mrb[0].mxu0
    %v253 = vadd.f32 0.0, %v252
    %v254 = vpop.f32.mrb[0].mxu0
    %v255 = vpop.f32.mrb[0].mxu0
    %v256 = vadd.f32 0.0, %v255
    %v257 = vpop.f32.mrb[0].mxu0
    %258 = vmatprep.mubr.bf16.mxu0 0
    %259 = vmatmul.mubr.bf16.gmra.mrb[0].mxu0 %v96
    %v260 = vpop.f32.mrb[0].mxu0
    %v261 = vadd.f32 0.0, %v260
    %v262 = vpop.f32.mrb[0].mxu0
    %v263 = vpop.f32.mrb[0].mxu0
    %v264 = vadd.f32 0.0, %v263
    %v265 = vpop.f32.mrb[0].mxu0
    %266 = vmatprep.mubr.bf16.mxu0 0
    %267 = vmatmul.mubr.bf16.gmra.mrb[0].mxu0 %v97
    %v268 = vpop.f32.mrb[0].mxu0
    %v269 = vadd.f32 0.0, %v268
    %v270 = vpop.f32.mrb[0].mxu0
    %v271 = vpop.f32.mrb[0].mxu0
    %v272 = vadd.f32 0.0, %v271
    %v273 = vpop.f32.mrb[0].mxu0
    %274 = vdwg.mxu0
    %v275 = vadd.f32 %v98, %v213
    %v276 = vadd.f32 %v99, %v216
    %v277 = vadd.f32 %v100, %v221
    %v278 = vadd.f32 %v101, %v224
    %v279 = vadd.f32 %v102, %v229
    %v280 = vadd.f32 %v103, %v232
    %v281 = vadd.f32 %v104, %v237
    %v282 = vadd.f32 %v105, %v240
    %v283 = vadd.f32 %v106, %v245
    %v284 = vadd.f32 %v107, %v248
    %v285 = vadd.f32 %v108, %v253
    %v286 = vadd.f32 %v109, %v256
    %v287 = vadd.f32 %v110, %v261
    %v288 = vadd.f32 %v111, %v264
    %v289 = vadd.f32 %v112, %v269
    %v290 = vadd.f32 %v113, %v272
    %291 = vst [vmem:[#allocation2] sm:$0xff] %v275
    %292 = vst [vmem:[#allocation2 + $0x8] sm:$0xff] %v276
    %293 = vst [vmem:[#allocation2 + $0x10] sm:$0xff] %v277
    %294 = vst [vmem:[#allocation2 + $0x18] sm:$0xff] %v278
    %295 = vst [vmem:[#allocation2 + $0x20] sm:$0xff] %v279
    %296 = vst [vmem:[#allocation2 + $0x28] sm:$0xff] %v280
    %297 = vst [vmem:[#allocation2 + $0x30] sm:$0xff] %v281
    %298 = vst [vmem:[#allocation2 + $0x38] sm:$0xff] %v282
    %299 = vst [vmem:[#allocation2 + $0x40] sm:$0xff] %v283
    %300 = vst [vmem:[#allocation2 + $0x48] sm:$0xff] %v284
    %301 = vst [vmem:[#allocation2 + $0x50] sm:$0xff] %v285
    %302 = vst [vmem:[#allocation2 + $0x58] sm:$0xff] %v286
    %303 = vst [vmem:[#allocation2 + $0x60] sm:$0xff] %v287
    %304 = vst [vmem:[#allocation2 + $0x68] sm:$0xff] %v288
    %305 = vst [vmem:[#allocation2 + $0x70] sm:$0xff] %v289
    %306 = vst [vmem:[#allocation2 + $0x78] sm:$0xff] %v290
    // Predicated region
    $region42: #{tpu_custom_call.1} parent=1 // pred_check
      %p307 = pneg %p66
    $region43: #{tpu_custom_call.1} parent=1 // pred_check_branch
      %309 = sbr.rel (%p307) target = $region45
    $region44: #{tpu_custom_call.1} parent=1 // pred_region
      %v310 = vld [vmem:[#allocation2] sm:$0xff]
      %v311 = vld [vmem:[#allocation2 + $0x8] sm:$0xff]
      %v312 = vld [vmem:[#allocation2 + $0x10] sm:$0xff]
      %v313 = vld [vmem:[#allocation2 + $0x18] sm:$0xff]
      %v314 = vld [vmem:[#allocation2 + $0x20] sm:$0xff]
      %v315 = vld [vmem:[#allocation2 + $0x28] sm:$0xff]
      %v316 = vld [vmem:[#allocation2 + $0x30] sm:$0xff]
      %v317 = vld [vmem:[#allocation2 + $0x38] sm:$0xff]
      %v318 = vld [vmem:[#allocation2 + $0x40] sm:$0xff]
      %v319 = vld [vmem:[#allocation2 + $0x48] sm:$0xff]
      %v320 = vld [vmem:[#allocation2 + $0x50] sm:$0xff]
      %v321 = vld [vmem:[#allocation2 + $0x58] sm:$0xff]
      %v322 = vld [vmem:[#allocation2 + $0x60] sm:$0xff]
      %v323 = vld [vmem:[#allocation2 + $0x68] sm:$0xff]
      %v324 = vld [vmem:[#allocation2 + $0x70] sm:$0xff]
      %v325 = vld [vmem:[#allocation2 + $0x78] sm:$0xff]
      %v326 = vld [vmem:[%s3] sm:$0xff]
      %v327 = vld [vmem:[%s3 + $0x8] sm:$0xff]
      %v328 = vld [vmem:[%s3 + $0x10] sm:$0xff]
      %v329 = vld [vmem:[%s3 + $0x18] sm:$0xff]
      %v330 = vld [vmem:[%s3 + $0x20] sm:$0xff]
      %v331 = vld [vmem:[%s3 + $0x28] sm:$0xff]
      %v332 = vld [vmem:[%s3 + $0x30] sm:$0xff]
      %v333 = vld [vmem:[%s3 + $0x38] sm:$0xff]
      %v334 = vld [vmem:[%s3 + $0x40] sm:$0xff]
      %v335 = vld [vmem:[%s3 + $0x48] sm:$0xff]
      %v336 = vld [vmem:[%s3 + $0x50] sm:$0xff]
      %v337 = vld [vmem:[%s3 + $0x58] sm:$0xff]
      %v338 = vld [vmem:[%s3 + $0x60] sm:$0xff]
      %v339 = vld [vmem:[%s3 + $0x68] sm:$0xff]
      %v340 = vld [vmem:[%s3 + $0x70] sm:$0xff]
      %v341 = vld [vmem:[%s3 + $0x78] sm:$0xff]
      %343 = vset.pattern.permute.xlu0 0
      %344 = vperm.xlu0 %343, %v326
      %v345 = vpop.permute.xlu0 %344
      %348 = vset.pattern.permute.xlu0 0
      %349 = vperm.xlu0 %348, %v327
      %v350 = vpop.permute.xlu0 %349
      %353 = vset.pattern.permute.xlu0 0
      %354 = vperm.xlu0 %353, %v328
      %v355 = vpop.permute.xlu0 %354
      %358 = vset.pattern.permute.xlu0 0
      %359 = vperm.xlu0 %358, %v329
      %v360 = vpop.permute.xlu0 %359
      %363 = vset.pattern.permute.xlu0 0
      %364 = vperm.xlu0 %363, %v330
      %v365 = vpop.permute.xlu0 %364
      %368 = vset.pattern.permute.xlu0 0
      %369 = vperm.xlu0 %368, %v331
      %v370 = vpop.permute.xlu0 %369
      %373 = vset.pattern.permute.xlu0 0
      %374 = vperm.xlu0 %373, %v332
      %v375 = vpop.permute.xlu0 %374
      %378 = vset.pattern.permute.xlu0 0
      %379 = vperm.xlu0 %378, %v333
      %v380 = vpop.permute.xlu0 %379
      %383 = vset.pattern.permute.xlu0 0
      %384 = vperm.xlu0 %383, %v334
      %v385 = vpop.permute.xlu0 %384
      %388 = vset.pattern.permute.xlu0 0
      %389 = vperm.xlu0 %388, %v335
      %v390 = vpop.permute.xlu0 %389
      %393 = vset.pattern.permute.xlu0 0
      %394 = vperm.xlu0 %393, %v336
      %v395 = vpop.permute.xlu0 %394
      %398 = vset.pattern.permute.xlu0 0
      %399 = vperm.xlu0 %398, %v337
      %v400 = vpop.permute.xlu0 %399
      %403 = vset.pattern.permute.xlu0 0
      %404 = vperm.xlu0 %403, %v338
      %v405 = vpop.permute.xlu0 %404
      %408 = vset.pattern.permute.xlu0 0
      %409 = vperm.xlu0 %408, %v339
      %v410 = vpop.permute.xlu0 %409
      %413 = vset.pattern.permute.xlu0 0
      %414 = vperm.xlu0 %413, %v340
      %v415 = vpop.permute.xlu0 %414
      %418 = vset.pattern.permute.xlu0 0
      %419 = vperm.xlu0 %418, %v341
      %v420 = vpop.permute.xlu0 %419
      %v422 = vmul.f32 %v310, %v345
      %v423 = vmul.f32 %v311, %v350
      %v424 = vmul.f32 %v312, %v355
      %v425 = vmul.f32 %v313, %v360
      %v426 = vmul.f32 %v314, %v365
      %v427 = vmul.f32 %v315, %v370
      %v428 = vmul.f32 %v316, %v375
      %v429 = vmul.f32 %v317, %v380
      %v430 = vmul.f32 %v318, %v385
      %v431 = vmul.f32 %v319, %v390
      %v432 = vmul.f32 %v320, %v395
      %v433 = vmul.f32 %v321, %v400
      %v434 = vmul.f32 %v322, %v405
      %v435 = vmul.f32 %v323, %v410
      %v436 = vmul.f32 %v324, %v415
      %v437 = vmul.f32 %v325, %v420
      %v438 = vpack.c.bf16 %v423, %v422
      %v439 = vpack.c.bf16 %v425, %v424
      %v440 = vpack.c.bf16 %v427, %v426
      %v441 = vpack.c.bf16 %v429, %v428
      %v442 = vpack.c.bf16 %v431, %v430
      %v443 = vpack.c.bf16 %v433, %v432
      %v444 = vpack.c.bf16 %v435, %v434
      %v445 = vpack.c.bf16 %v437, %v436
      %v446 = vld [vmem:[#allocation8] sm:$0xf]
      %v447 = vld [vmem:[#allocation8 + $0x4] sm:$0xf]
      %v448 = vld [vmem:[#allocation8 + $0x8] sm:$0xf]
      %v449 = vld [vmem:[#allocation8 + $0xc] sm:$0xf]
      %v450 = vld [vmem:[#allocation8 + $0x10] sm:$0xf]
      %v451 = vld [vmem:[#allocation8 + $0x14] sm:$0xf]
      %v452 = vld [vmem:[#allocation8 + $0x18] sm:$0xf]
      %v453 = vld [vmem:[#allocation8 + $0x1c] sm:$0xf]
      %v454 = vld [vmem:[#allocation8 + $0x20] sm:$0xf]
      %v455 = vld [vmem:[#allocation8 + $0x24] sm:$0xf]
      %v456 = vld [vmem:[#allocation8 + $0x28] sm:$0xf]
      %v457 = vld [vmem:[#allocation8 + $0x2c] sm:$0xf]
      %v458 = vld [vmem:[#allocation8 + $0x30] sm:$0xf]
      %v459 = vld [vmem:[#allocation8 + $0x34] sm:$0xf]
      %v460 = vld [vmem:[#allocation8 + $0x38] sm:$0xf]
      %v461 = vld [vmem:[#allocation8 + $0x3c] sm:$0xf]
      %v478 = vunpack.c.l.b16 %v446
      %v479 = vunpack.c.l.b16 %v447
      %v480 = vunpack.c.l.b16 %v448
      %v481 = vunpack.c.l.b16 %v449
      %v482 = vunpack.c.l.b16 %v450
      %v483 = vunpack.c.l.b16 %v451
      %v484 = vunpack.c.l.b16 %v452
      %v485 = vunpack.c.l.b16 %v453
      %v486 = vunpack.c.l.b16 %v454
      %v487 = vunpack.c.l.b16 %v455
      %v488 = vunpack.c.l.b16 %v456
      %v489 = vunpack.c.l.b16 %v457
      %v490 = vunpack.c.l.b16 %v458
      %v491 = vunpack.c.l.b16 %v459
      %v492 = vunpack.c.l.b16 %v460
      %v493 = vunpack.c.l.b16 %v461
      %v494 = vpack.c.b16 %v479, %v478
      %v495 = vpack.c.b16 %v481, %v480
      %v496 = vpack.c.b16 %v483, %v482
      %v497 = vpack.c.b16 %v485, %v484
      %v498 = vpack.c.b16 %v487, %v486
      %v499 = vpack.c.b16 %v489, %v488
      %v500 = vpack.c.b16 %v491, %v490
      %v501 = vpack.c.b16 %v493, %v492
      %v510 = vld [vmem:[%s4] sm:$0xf]
      %v511 = vld [vmem:[%s4 + $0x4] sm:$0xf]
      %v512 = vld [vmem:[%s4 + $0x8] sm:$0xf]
      %v513 = vld [vmem:[%s4 + $0xc] sm:$0xf]
      %v514 = vld [vmem:[%s4 + $0x10] sm:$0xf]
      %v515 = vld [vmem:[%s4 + $0x14] sm:$0xf]
      %v516 = vld [vmem:[%s4 + $0x18] sm:$0xf]
      %v517 = vld [vmem:[%s4 + $0x1c] sm:$0xf]
      %v518 = vld [vmem:[%s4 + $0x20] sm:$0xf]
      %v519 = vld [vmem:[%s4 + $0x24] sm:$0xf]
      %v520 = vld [vmem:[%s4 + $0x28] sm:$0xf]
      %v521 = vld [vmem:[%s4 + $0x2c] sm:$0xf]
      %v522 = vld [vmem:[%s4 + $0x30] sm:$0xf]
      %v523 = vld [vmem:[%s4 + $0x34] sm:$0xf]
      %v524 = vld [vmem:[%s4 + $0x38] sm:$0xf]
      %v525 = vld [vmem:[%s4 + $0x3c] sm:$0xf]
      %v526 = vld [vmem:[%s4 + $0x40] sm:$0xf]
      %v527 = vld [vmem:[%s4 + $0x44] sm:$0xf]
      %v528 = vld [vmem:[%s4 + $0x48] sm:$0xf]
      %v529 = vld [vmem:[%s4 + $0x4c] sm:$0xf]
      %v530 = vld [vmem:[%s4 + $0x50] sm:$0xf]
      %v531 = vld [vmem:[%s4 + $0x54] sm:$0xf]
      %v532 = vld [vmem:[%s4 + $0x58] sm:$0xf]
      %v533 = vld [vmem:[%s4 + $0x5c] sm:$0xf]
      %v534 = vld [vmem:[%s4 + $0x60] sm:$0xf]
      %v535 = vld [vmem:[%s4 + $0x64] sm:$0xf]
      %v536 = vld [vmem:[%s4 + $0x68] sm:$0xf]
      %v537 = vld [vmem:[%s4 + $0x6c] sm:$0xf]
      %v538 = vld [vmem:[%s4 + $0x70] sm:$0xf]
      %v539 = vld [vmem:[%s4 + $0x74] sm:$0xf]
      %v540 = vld [vmem:[%s4 + $0x78] sm:$0xf]
      %v541 = vld [vmem:[%s4 + $0x7c] sm:$0xf]
      %v542 = vld [vmem:[%s5] sm:$0x1]
      %v544 = vlaneseq
      %v545 = vshrl.u32 %v544, 7
      %v546 = vsub.s32 0, %v545
      %v547 = vrot.slane %v542, %v546
      %v581 = vunpack.c.l.b16 %v510
      %v582 = vunpack.c.l.b16 %v511
      %v583 = vunpack.c.l.b16 %v512
      %v584 = vunpack.c.l.b16 %v513
      %v585 = vunpack.c.l.b16 %v514
      %v586 = vunpack.c.l.b16 %v515
      %v587 = vunpack.c.l.b16 %v516
      %v588 = vunpack.c.l.b16 %v517
      %v589 = vunpack.c.l.b16 %v518
      %v590 = vunpack.c.l.b16 %v519
      %v591 = vunpack.c.l.b16 %v520
      %v592 = vunpack.c.l.b16 %v521
      %v593 = vunpack.c.l.b16 %v522
      %v594 = vunpack.c.l.b16 %v523
      %v595 = vunpack.c.l.b16 %v524
      %v596 = vunpack.c.l.b16 %v525
      %v597 = vunpack.c.l.b16 %v526
      %v598 = vunpack.c.l.b16 %v527
      %v599 = vunpack.c.l.b16 %v528
      %v600 = vunpack.c.l.b16 %v529
      %v601 = vunpack.c.l.b16 %v530
      %v602 = vunpack.c.l.b16 %v531
      %v603 = vunpack.c.l.b16 %v532
      %v604 = vunpack.c.l.b16 %v533
      %v605 = vunpack.c.l.b16 %v534
      %v606 = vunpack.c.l.b16 %v535
      %v607 = vunpack.c.l.b16 %v536
      %v608 = vunpack.c.l.b16 %v537
      %v609 = vunpack.c.l.b16 %v538
      %v610 = vunpack.c.l.b16 %v539
      %v611 = vunpack.c.l.b16 %v540
      %v612 = vunpack.c.l.b16 %v541
      %v613 = vpack.c.b16 %v582, %v581
      %v614 = vpack.c.b16 %v584, %v583
      %v615 = vpack.c.b16 %v586, %v585
      %v616 = vpack.c.b16 %v588, %v587
      %v617 = vpack.c.b16 %v590, %v589
      %v618 = vpack.c.b16 %v592, %v591
      %v619 = vpack.c.b16 %v594, %v593
      %v620 = vpack.c.b16 %v596, %v595
      %v621 = vpack.c.b16 %v598, %v597
      %v622 = vpack.c.b16 %v600, %v599
      %v623 = vpack.c.b16 %v602, %v601
      %v624 = vpack.c.b16 %v604, %v603
      %v625 = vpack.c.b16 %v606, %v605
      %v626 = vpack.c.b16 %v608, %v607
      %v627 = vpack.c.b16 %v610, %v609
      %v628 = vpack.c.b16 %v612, %v611
      %645 = vmatprep.subr.bf16.mxu0 0
      %646 = vmatpush1.bf16.msra.mxu0 %v613
      %647 = vmatprep.subr.bf16.mxu0 0
      %648 = vmatpush1.bf16.msra.mxu0 %v614
      %649 = vmatprep.subr.bf16.mxu0 0
      %650 = vmatpush1.bf16.msra.mxu0 %v615
      %651 = vmatprep.subr.bf16.mxu0 0
      %652 = vmatpush1.bf16.msra.mxu0 %v616
      %653 = vmatprep.subr.bf16.mxu0 0
      %654 = vmatpush1.bf16.msra.mxu0 %v617
      %655 = vmatprep.subr.bf16.mxu0 0
      %656 = vmatpush1.bf16.msra.mxu0 %v618
      %657 = vmatprep.subr.bf16.mxu0 0
      %658 = vmatpush1.bf16.msra.mxu0 %v619
      %659 = vmatprep.subr.bf16.mxu0 0
      %660 = vmatpush1.bf16.msra.mxu0 %v620
      %661 = vmatprep.subr.bf16.mxu0 0
      %662 = vmatpush1.bf16.msra.mxu0 %v621
      %663 = vmatprep.subr.bf16.mxu0 0
      %664 = vmatpush1.bf16.msra.mxu0 %v622
      %665 = vmatprep.subr.bf16.mxu0 0
      %666 = vmatpush1.bf16.msra.mxu0 %v623
      %667 = vmatprep.subr.bf16.mxu0 0
      %668 = vmatpush1.bf16.msra.mxu0 %v624
      %669 = vmatprep.subr.bf16.mxu0 0
      %670 = vmatpush1.bf16.msra.mxu0 %v625
      %671 = vmatprep.subr.bf16.mxu0 0
      %672 = vmatpush1.bf16.msra.mxu0 %v626
      %673 = vmatprep.subr.bf16.mxu0 0
      %674 = vmatpush1.bf16.msra.mxu0 %v627
      %675 = vmatprep.subr.bf16.mxu0 0
      %676 = vmatpush1.bf16.msra.mxu0 %v628
      %677 = vmatprep.mubr.bf16.mxu0 %v494
      %678 = vmatmul.mubr.bf16.gmra.mrb[0].mxu0 %v438
      %v679 = vpop.f32.mrb[0].mxu0
      %v680 = vadd.f32 %v547, %v679
      %v681 = vpop.f32.mrb[0].mxu0
      %v682 = vpop.f32.mrb[0].mxu0
      %v683 = vadd.f32 %v547, %v682
      %v684 = vpop.f32.mrb[0].mxu0
      %685 = vmatprep.mubr.bf16.mxu0 %v495
      %686 = vmatmul.mubr.bf16.gmra.mrb[0].mxu0 %v439
      %v687 = vpop.f32.mrb[0].mxu0
      %v688 = vadd.f32 %v547, %v687
      %v689 = vpop.f32.mrb[0].mxu0
      %v690 = vpop.f32.mrb[0].mxu0
      %v691 = vadd.f32 %v547, %v690
      %v692 = vpop.f32.mrb[0].mxu0
      %693 = vmatprep.mubr.bf16.mxu0 %v496
      %694 = vmatmul.mubr.bf16.gmra.mrb[0].mxu0 %v440
      %v695 = vpop.f32.mrb[0].mxu0
      %v696 = vadd.f32 %v547, %v695
      %v697 = vpop.f32.mrb[0].mxu0
      %v698 = vpop.f32.mrb[0].mxu0
      %v699 = vadd.f32 %v547, %v698
      %v700 = vpop.f32.mrb[0].mxu0
      %701 = vmatprep.mubr.bf16.mxu0 %v497
      %702 = vmatmul.mubr.bf16.gmra.mrb[0].mxu0 %v441
      %v703 = vpop.f32.mrb[0].mxu0
      %v704 = vadd.f32 %v547, %v703
      %v705 = vpop.f32.mrb[0].mxu0
      %v706 = vpop.f32.mrb[0].mxu0
      %v707 = vadd.f32 %v547, %v706
      %v708 = vpop.f32.mrb[0].mxu0
      %709 = vmatprep.mubr.bf16.mxu0 %v498
      %710 = vmatmul.mubr.bf16.gmra.mrb[0].mxu0 %v442
      %v711 = vpop.f32.mrb[0].mxu0
      %v712 = vadd.f32 %v547, %v711
      %v713 = vpop.f32.mrb[0].mxu0
      %v714 = vpop.f32.mrb[0].mxu0
      %v715 = vadd.f32 %v547, %v714
      %v716 = vpop.f32.mrb[0].mxu0
      %717 = vmatprep.mubr.bf16.mxu0 %v499
      %718 = vmatmul.mubr.bf16.gmra.mrb[0].mxu0 %v443
      %v719 = vpop.f32.mrb[0].mxu0
      %v720 = vadd.f32 %v547, %v719
      %v721 = vpop.f32.mrb[0].mxu0
      %v722 = vpop.f32.mrb[0].mxu0
      %v723 = vadd.f32 %v547, %v722
      %v724 = vpop.f32.mrb[0].mxu0
      %725 = vmatprep.mubr.bf16.mxu0 %v500
      %726 = vmatmul.mubr.bf16.gmra.mrb[0].mxu0 %v444
      %v727 = vpop.f32.mrb[0].mxu0
      %v728 = vadd.f32 %v547, %v727
      %v729 = vpop.f32.mrb[0].mxu0
      %v730 = vpop.f32.mrb[0].mxu0
      %v731 = vadd.f32 %v547, %v730
      %v732 = vpop.f32.mrb[0].mxu0
      %733 = vmatprep.mubr.bf16.mxu0 %v501
      %734 = vmatmul.mubr.bf16.gmra.mrb[0].mxu0 %v445
      %v735 = vpop.f32.mrb[0].mxu0
      %v736 = vadd.f32 %v547, %v735
      %v737 = vpop.f32.mrb[0].mxu0
      %v738 = vpop.f32.mrb[0].mxu0
      %v739 = vadd.f32 %v547, %v738
      %v740 = vpop.f32.mrb[0].mxu0
      %741 = vdwg.mxu0
      %v742 = vmax.f32 %v680, 0.0
      %v743 = vmax.f32 %v683, 0.0
      %v744 = vmax.f32 %v688, 0.0
      %v745 = vmax.f32 %v691, 0.0
      %v746 = vmax.f32 %v696, 0.0
      %v747 = vmax.f32 %v699, 0.0
      %v748 = vmax.f32 %v704, 0.0
      %v749 = vmax.f32 %v707, 0.0
      %v750 = vmax.f32 %v712, 0.0
      %v751 = vmax.f32 %v715, 0.0
      %v752 = vmax.f32 %v720, 0.0
      %v753 = vmax.f32 %v723, 0.0
      %v754 = vmax.f32 %v728, 0.0
      %v755 = vmax.f32 %v731, 0.0
      %v756 = vmax.f32 %v736, 0.0
      %v757 = vmax.f32 %v739, 0.0
      %v758 = vpack.c.bf16 %v743, %v742
      %v759 = vpack.c.bf16 %v745, %v744
      %v760 = vpack.c.bf16 %v747, %v746
      %v761 = vpack.c.bf16 %v749, %v748
      %v762 = vpack.c.bf16 %v751, %v750
      %v763 = vpack.c.bf16 %v753, %v752
      %v764 = vpack.c.bf16 %v755, %v754
      %v765 = vpack.c.bf16 %v757, %v756
      %v774 = vunpack.c.l.b16 %v758
      %v775 = vunpack.c.h.b16 %v758
      %v776 = vunpack.c.l.b16 %v759
      %v777 = vunpack.c.h.b16 %v759
      %v778 = vunpack.c.l.b16 %v760
      %v779 = vunpack.c.h.b16 %v760
      %v780 = vunpack.c.l.b16 %v761
      %v781 = vunpack.c.h.b16 %v761
      %v782 = vunpack.c.l.b16 %v762
      %v783 = vunpack.c.h.b16 %v762
      %v784 = vunpack.c.l.b16 %v763
      %v785 = vunpack.c.h.b16 %v763
      %v786 = vunpack.c.l.b16 %v764
      %v787 = vunpack.c.h.b16 %v764
      %v788 = vunpack.c.l.b16 %v765
      %v789 = vunpack.c.h.b16 %v765
      %v790 = vpack.c.b16 %v774, %v774
      %v791 = vpack.c.b16 %v775, %v775
      %v792 = vpack.c.b16 %v776, %v776
      %v793 = vpack.c.b16 %v777, %v777
      %v794 = vpack.c.b16 %v778, %v778
      %v795 = vpack.c.b16 %v779, %v779
      %v796 = vpack.c.b16 %v780, %v780
      %v797 = vpack.c.b16 %v781, %v781
      %v798 = vpack.c.b16 %v782, %v782
      %v799 = vpack.c.b16 %v783, %v783
      %v800 = vpack.c.b16 %v784, %v784
      %v801 = vpack.c.b16 %v785, %v785
      %v802 = vpack.c.b16 %v786, %v786
      %v803 = vpack.c.b16 %v787, %v787
      %v804 = vpack.c.b16 %v788, %v788
      %v805 = vpack.c.b16 %v789, %v789
      %822 = vst [vmem:[#allocation9] sm:$0xf] %v790
      %823 = vst [vmem:[#allocation9 + $0x4] sm:$0xf] %v791
      %824 = vst [vmem:[#allocation9 + $0x8] sm:$0xf] %v792
      %825 = vst [vmem:[#allocation9 + $0xc] sm:$0xf] %v793
      %826 = vst [vmem:[#allocation9 + $0x10] sm:$0xf] %v794
      %827 = vst [vmem:[#allocation9 + $0x14] sm:$0xf] %v795
      %828 = vst [vmem:[#allocation9 + $0x18] sm:$0xf] %v796
      %829 = vst [vmem:[#allocation9 + $0x1c] sm:$0xf] %v797
      %830 = vst [vmem:[#allocation9 + $0x20] sm:$0xf] %v798
      %831 = vst [vmem:[#allocation9 + $0x24] sm:$0xf] %v799
      %832 = vst [vmem:[#allocation9 + $0x28] sm:$0xf] %v800
      %833 = vst [vmem:[#allocation9 + $0x2c] sm:$0xf] %v801
      %834 = vst [vmem:[#allocation9 + $0x30] sm:$0xf] %v802
      %835 = vst [vmem:[#allocation9 + $0x34] sm:$0xf] %v803
      %836 = vst [vmem:[#allocation9 + $0x38] sm:$0xf] %v804
      %837 = vst [vmem:[#allocation9 + $0x3c] sm:$0xf] %v805
    $region45: #{tpu_custom_call.1} parent=1 // pred_fallthru
      _
    // Predicated region
    $region46: #{tpu_custom_call.1} parent=1 // pred_check
      _
    $region47: #{tpu_custom_call.1} parent=1 // pred_check_branch
      %839 = sbr.rel (0) target = $region49
    $region48: #{tpu_custom_call.1} parent=1 // pred_region
      %s841 = ssub.s32 1024, 1024
      %842 = vsyncadd [#allocation5], %s841
      %s843 = sshll.u32 [#allocation9], 4
      %s844 = int_to_ptr.vmem [resolvable:$true] %s843
      %849 = dma.vmem_to_hbm [thread:$0]  %s844, 1024, %s6, [#allocation5], 64, 64, 4
    $region49: #{tpu_custom_call.1} parent=1 // pred_fallthru
      _
    // Predicated region
    $region50: #{tpu_custom_call.1} parent=1 // pred_check
      _
    $region51: #{tpu_custom_call.1} parent=1 // pred_check_branch
      %851 = sbr.rel (0) target = $region53
    $region52: #{tpu_custom_call.1} parent=1 // pred_region
      %852 = dma.done [#allocation5], 1024
    $region53: #{tpu_custom_call.1} parent=1 // pred_fallthru
      _
    %853 = vsyncpa [#allocation4], 1
    %854 = vsyncpa [#allocation7], 1
    %855 = vsyncpa [#allocation5], 1

</llo_original>
